<compile_context>
chip_gen: v7x
topology: tpu7x:2x2x1
jax: 0.10.0
libtpu: 0.0.40
codegen_flags: <defaults>
</compile_context>

<pallas_src>
import functools
import math

import jax
import jax.numpy as jnp
from jax import lax
from jax.experimental import pallas as pl
from jax.experimental.pallas import tpu as pltpu


# ----------------------- config (mirrors LMConfig fields used) ----------------
DIM = 32                   # config.dim (gating_dim)
N_ROUTED_EXPERTS = 8       # config.n_routed_experts
TOP_K = 2                  # config.num_experts_per_tok
NORM_TOPK_PROB = True      # config.norm_topk_prob
SCORING_FUNC = "softmax"   # config.scoring_func
AUX_LOSS_ALPHA = 0.0       # config.aux_loss_alpha (eval / no aux loss)


# ----------------------------- Pallas kernel ----------------------------------
def moe_gate_kernel(x_ref, w_ref, topk_w_ref, topk_i_ref, *, top_k, norm_topk):
    # x: (tm, H) tokens-on-sublanes tile, native dtype (f32 or bf16).
    # w: (E, H) gate weight, same dtype as x (wrapper casts the 1 KiB weight once).
    x = x_ref[...]
    w = w_ref[...]

    # logits_t[e, t] = sum_h w[e, h] * x[t, h]  -> (E, tm), f32 MXU accumulation.
    # experts on sublanes, tokens on lanes: every subsequent vector op is
    # fully lane-dense (8 x 128 per vreg).
    logits_t = lax.dot_general(
        w, x, (((1,), (1,)), ((), ())),
        preferred_element_type=jnp.float32)               # (E, tm)

    # numerically-stable exp over the expert (sublane) axis
    m = jnp.max(logits_t, axis=0, keepdims=True)          # (1, tm)
    e = jnp.exp(logits_t - m)                              # (E, tm)

    num_experts = e.shape[0]
    idxs = lax.broadcasted_iota(jnp.int32, e.shape, 0)

    # Iterative top-k over experts (k small & static): max, record, mask, repeat.
    # exp() is monotone, so ranking on e equals ranking on softmax(logits).
    work = e
    vals, inds = [], []
    neg_inf = jnp.float32(-jnp.inf)
    for _ in range(top_k):
        v = jnp.max(work, axis=0, keepdims=True)                       # (1, tm)
        is_max = work == v
        idx = jnp.min(jnp.where(is_max, idxs, num_experts),
                      axis=0, keepdims=True)                           # (1, tm)
        vals.append(v)
        inds.append(idx)
        work = jnp.where(idxs == idx, neg_inf, work)

    tw = jnp.concatenate(vals, axis=0)                    # (K, tm)
    ti = jnp.concatenate(inds, axis=0)                    # (K, tm)

    if top_k > 1 and norm_topk:
        # The global softmax denominator cancels under the top-k renorm, so we
        # never build the full softmax: normalize the K selected exp values
        # with a single EXACT divide on the small (1, tm) sum.
        s = jnp.sum(tw, axis=0, keepdims=True)
        tw = tw / s
    else:
        # Weights must be true softmax probabilities (e.g. top_k == 1 or
        # norm_topk_prob == False): exact divide by the full denominator.
        denom = jnp.sum(e, axis=0, keepdims=True)
        tw = tw / denom

    # lane-dense (K, tm) stores (last dim is the 128-lane token axis)
    topk_w_ref[...] = tw.astype(topk_w_ref.dtype)
    topk_i_ref[...] = ti.astype(topk_i_ref.dtype)


# ------------------------------- wrapper ---------------------------------------
def _choose_tm(n_tokens, tm_max=8192):
    """Row-tile size.

    Large (amortize the ~0.35us per-grid-step overhead; at H=32 the tile is
    only tm*128B lane-padded in VMEM so even tm=8192 is ~4 MiB/buffer),
    lane-dense (multiple of 128 so the (K, tm) output blocks store unmasked),
    and with an EVEN grid-step count (>=2) for large N so v7x's dual
    TensorCores both get balanced work.
    """
    if n_tokens <= 256:
        return n_tokens                     # single exact block, no partials
    steps = max(2, -(-n_tokens // tm_max))  # at least 2 steps
    if steps % 2:
        steps += 1                          # even split across 2 TCs (v7x)
    tm = -(-n_tokens // steps)
    tm = ((tm + 127) // 128) * 128          # round up to multiple of 128
    return max(128, min(tm_max, tm))


def moe_gate_forward(hidden_states, weight, *, top_k=TOP_K,
                     norm_topk_prob=NORM_TOPK_PROB, tm=None,
                     weight_dtype=jnp.float32, idx_dtype=jnp.int32,
                     experts_major_output=False):
    """Pallas MoE gate. Returns (topk_idx, topk_weight, aux_loss).

    experts_major_output=True returns lane-dense (K, N) outputs directly and
    skips the two wrapper transposes (an extra HBM pass each) -- use it when
    the downstream MoE dispatch can consume that layout.
    weight_dtype / idx_dtype can be narrowed (bf16 / int8) to cut writeback
    bytes on bandwidth-limited parts (v5e); defaults keep module parity.
    """
    bsz, seq_len, h = hidden_states.shape
    x = hidden_states.reshape(-1, h)                      # (N, H), original dtype
    n_tokens = x.shape[0]
    n_experts = weight.shape[0]

    if tm is None:
        tm = _choose_tm(n_tokens)

    # Match the 1 KiB gate weight to the activation dtype once, so bf16
    # activations take the single-pass bf16 MXU path (f32 accumulation).
    w = weight if weight.dtype == x.dtype else weight.astype(x.dtype)

    grid = (pl.cdiv(n_tokens, tm),)   # no wrapper padding; last block may be partial

    kernel = functools.partial(
        moe_gate_kernel, top_k=top_k, norm_topk=norm_topk_prob
    )

    bytes_out = n_tokens * top_k * (jnp.dtype(weight_dtype).itemsize
                                    + jnp.dtype(idx_dtype).itemsize)
    cost = pl.CostEstimate(
        flops=2 * n_tokens * h * n_experts,
        transcendentals=n_tokens * n_experts,
        bytes_accessed=(n_tokens * h * x.dtype.itemsize
                        + n_experts * h * w.dtype.itemsize
                        + bytes_out),
    )

    topk_w_t, topk_i_t = pl.pallas_call(
        kernel,
        out_shape=(
            jax.ShapeDtypeStruct((top_k, n_tokens), weight_dtype),
            jax.ShapeDtypeStruct((top_k, n_tokens), idx_dtype),
        ),
        grid_spec=pltpu.PrefetchScalarGridSpec(
            num_scalar_prefetch=0,
            grid=grid,
            in_specs=[
                pl.BlockSpec((tm, h), lambda i: (i, 0)),            # tokens tile
                pl.BlockSpec((n_experts, h), lambda i: (0, 0)),     # gate weight (resident, 1 KiB)
            ],
            out_specs=[
                pl.BlockSpec((top_k, tm), lambda i: (0, i)),        # lane-dense
                pl.BlockSpec((top_k, tm), lambda i: (0, i)),        # lane-dense
            ],
        ),
        compiler_params=pltpu.CompilerParams(
            dimension_semantics=("parallel",),
            vmem_limit_bytes=32 << 20,   # explicit: large tiles also fit v5e's scoped default
        ),
        cost_estimate=cost,
    )(x, w)

    aux_loss = jnp.float32(0.0)

    if experts_major_output:
        # lane-dense (K, N) outputs, no extra HBM passes
        return topk_i_t, topk_w_t, aux_loss

    # layout plumbing back to the PyTorch convention (N, K)
    return jnp.transpose(topk_i_t), jnp.transpose(topk_w_t), aux_loss


# --------------------------- pure-JAX reference ---------------------------------
def moe_gate_reference(hidden_states, weight, *, top_k=TOP_K,
                       norm_topk_prob=NORM_TOPK_PROB):
    bsz, seq_len, h = hidden_states.shape
    x = hidden_states.reshape(-1, h).astype(jnp.float32)
    logits = x @ weight.astype(jnp.float32).T
    scores = jax.nn.softmax(logits, axis=-1)
    tw, ti = jax.lax.top_k(scores, top_k)
    if top_k > 1 and norm_topk_prob:
        tw = tw / (jnp.sum(tw, axis=-1, keepdims=True) + 1e-20)
    return ti, tw


def _check(topk_idx, topk_w, ref_idx, ref_w, n_tokens):
    # sort by value since top-k order is unspecified
    order_k = jnp.argsort(-topk_w, axis=-1)
    order_r = jnp.argsort(-ref_w, axis=-1)
    tw_sorted = jnp.take_along_axis(topk_w, order_k, axis=-1)
    ti_sorted = jnp.take_along_axis(topk_idx, order_k, axis=-1)
    rw_sorted = jnp.take_along_axis(ref_w, order_r, axis=-1)
    ri_sorted = jnp.take_along_axis(ref_idx, order_r, axis=-1)

    assert topk_idx.shape == (n_tokens, TOP_K)
    assert topk_w.shape == (n_tokens, TOP_K)
    # exact divides in-kernel now -> tight tolerance
    assert jnp.allclose(tw_sorted, rw_sorted, atol=1e-4), "topk weights mismatch"
    assert jnp.array_equal(ti_sorted, ri_sorted), "topk indices mismatch"
    # normalized routing weights sum to ~1
    assert jnp.allclose(jnp.sum(topk_w, axis=-1), 1.0, atol=1e-4)


# ----------------------------------- main ---------------------------------------
if __name__ == "__main__":
    key = jax.random.PRNGKey(0)
    k_x, k_w, k_x2 = jax.random.split(key, 3)

    # kaiming_uniform_(a=sqrt(5)) -> U(-1/sqrt(fan_in), 1/sqrt(fan_in)), fan_in = DIM
    bound = 1.0 / math.sqrt(DIM)
    weight = jax.random.uniform(
        k_w, (N_ROUTED_EXPERTS, DIM), dtype=jnp.float32, minval=-bound, maxval=bound
    )

    # --- small shape consistent with the module (bsz=2, seq=8, dim=32) ---
    bsz, seq_len = 2, 8
    hidden_states = jax.random.normal(k_x, (bsz, seq_len, DIM), dtype=jnp.float32)

    topk_idx, topk_w, aux_loss = moe_gate_forward(hidden_states, weight)
    jax.block_until_ready((topk_idx, topk_w, aux_loss))

    ref_idx, ref_w = moe_gate_reference(hidden_states, weight)
    _check(topk_idx, topk_w, ref_idx, ref_w, bsz * seq_len)
    assert float(aux_loss) == 0.0

    # --- larger shape: exercises multi-step (even) grid + partial last block ---
    bsz2, seq2 = 2, 333                         # N = 666 -> tm = 384, grid = 2
    hs2 = jax.random.normal(k_x2, (bsz2, seq2, DIM), dtype=jnp.float32)
    idx2, w2, _ = moe_gate_forward(hs2, weight)
    jax.block_until_ready((idx2, w2))
    ref_idx2, ref_w2 = moe_gate_reference(hs2, weight)
    _check(idx2, w2, ref_idx2, ref_w2, bsz2 * seq2)

    # --- experts-major (K, N) output layout: no wrapper transposes ---
    idx_em, w_em, _ = moe_gate_forward(hs2, weight, experts_major_output=True)
    jax.block_until_ready((idx_em, w_em))
    assert idx_em.shape == (TOP_K, bsz2 * seq2)
    assert jnp.array_equal(jnp.transpose(idx_em), idx2)
    assert jnp.allclose(jnp.transpose(w_em), w2, atol=1e-6)

    # --- bf16 activations: MXU takes the bf16 path directly (f32 accumulation) ---
    hs_bf16 = hs2.astype(jnp.bfloat16)
    idx_b, w_b, _ = moe_gate_forward(hs_bf16, weight)
    jax.block_until_ready((idx_b, w_b))
    assert idx_b.shape == (bsz2 * seq2, TOP_K)
    assert bool(jnp.all((idx_b >= 0) & (idx_b < N_ROUTED_EXPERTS)))
    assert jnp.allclose(jnp.sum(w_b, axis=-1), 1.0, atol=1e-2)

    print("KERNEL_OK")
</pallas_src>

<mosaic_0001>
module attributes {stable_mosaic.version = 11 : i64} {
  func.func @moe_gate_kernel(%arg0: i32, %arg1: memref<16x32xf32, #tpu.memory_space<vmem>>, %arg2: memref<8x32xf32, #tpu.memory_space<vmem>>, %arg3: memref<2x16xf32, #tpu.memory_space<vmem>>, %arg4: memref<2x16xi32, #tpu.memory_space<vmem>>) attributes {dimension_semantics = [#tpu.dimension_semantics<parallel>], iteration_bounds = array<i64: 1>, scalar_prefetch = 0 : i64, scratch_operands = 0 : i64, tpu.core_type = #tpu.core_type<tc>, window_params = [{transform_indices = @transform_0, window_bounds = array<i64: 16, 32>}, {pipeline_mode = #tpu.pipeline_mode<synchronous>, transform_indices = @transform_1, window_bounds = array<i64: 8, 32>}, {transform_indices = @transform_2, window_bounds = array<i64: 2, 16>}, {transform_indices = @transform_3, window_bounds = array<i64: 2, 16>}]} {
    %c0 = arith.constant 0 : index
    %c0_0 = arith.constant 0 : index
    %0 = vector.load %arg1[%c0, %c0_0] : memref<16x32xf32, #tpu.memory_space<vmem>>, vector<16x32xf32>
    %c0_1 = arith.constant 0 : index
    %c0_2 = arith.constant 0 : index
    %1 = vector.load %arg2[%c0_1, %c0_2] : memref<8x32xf32, #tpu.memory_space<vmem>>, vector<8x32xf32>
    %cst = arith.constant dense<0.000000e+00> : vector<8x16xf32>
    %2 = tpu.matmul %1, %0, %cst {dimension_numbers = #tpu.dot_dimension_numbers<[1], [1], [0], [0], [0, 0, 1, 0], [], []>} : vector<8x32xf32>, vector<16x32xf32>, vector<8x16xf32> -> vector<8x16xf32>
    %cst_3 = arith.constant dense<0xFF800000> : vector<16xf32>
    %3 = vector.multi_reduction <maximumf>, %2, %cst_3 [0] : vector<8x16xf32> to vector<16xf32>
    %4 = vector.shape_cast %3 : vector<16xf32> to vector<1x16xf32>
    %5 = vector.broadcast %4 : vector<1x16xf32> to vector<8x16xf32>
    %6 = arith.subf %2, %5 : vector<8x16xf32>
    %7 = math.exp %6 : vector<8x16xf32>
    %8 = tpu.iota {dimensions = array<i32: 0>} : vector<8x16xi32>
    %cst_4 = arith.constant dense<0xFF800000> : vector<16xf32>
    %9 = vector.multi_reduction <maximumf>, %7, %cst_4 [0] : vector<8x16xf32> to vector<16xf32>
    %10 = vector.shape_cast %9 : vector<16xf32> to vector<1x16xf32>
    %11 = vector.broadcast %10 : vector<1x16xf32> to vector<8x16xf32>
    %12 = arith.cmpf oeq, %7, %11 : vector<8x16xf32>
    %c8_i32 = arith.constant 8 : i32
    %13 = vector.broadcast %c8_i32 : i32 to vector<8x16xi32>
    %14 = arith.select %12, %8, %13 : vector<8x16xi1>, vector<8x16xi32>
    %cst_5 = arith.constant dense<2147483647> : vector<16xi32>
    %15 = vector.multi_reduction <minsi>, %14, %cst_5 [0] : vector<8x16xi32> to vector<16xi32>
    %16 = vector.shape_cast %15 : vector<16xi32> to vector<1x16xi32>
    %17 = vector.broadcast %16 : vector<1x16xi32> to vector<8x16xi32>
    %18 = arith.cmpi eq, %8, %17 : vector<8x16xi32>
    %cst_6 = arith.constant 0xFF800000 : f32
    %19 = vector.broadcast %cst_6 : f32 to vector<8x16xf32>
    %20 = arith.select %18, %19, %7 : vector<8x16xi1>, vector<8x16xf32>
    %cst_7 = arith.constant dense<0xFF800000> : vector<16xf32>
    %21 = vector.multi_reduction <maximumf>, %20, %cst_7 [0] : vector<8x16xf32> to vector<16xf32>
    %22 = vector.shape_cast %21 : vector<16xf32> to vector<1x16xf32>
    %23 = vector.broadcast %22 : vector<1x16xf32> to vector<8x16xf32>
    %24 = arith.cmpf oeq, %20, %23 : vector<8x16xf32>
    %c8_i32_8 = arith.constant 8 : i32
    %25 = vector.broadcast %c8_i32_8 : i32 to vector<8x16xi32>
    %26 = arith.select %24, %8, %25 : vector<8x16xi1>, vector<8x16xi32>
    %cst_9 = arith.constant dense<2147483647> : vector<16xi32>
    %27 = vector.multi_reduction <minsi>, %26, %cst_9 [0] : vector<8x16xi32> to vector<16xi32>
    %28 = vector.shape_cast %27 : vector<16xi32> to vector<1x16xi32>
    %29 = tpu.concatenate %10, %22 in 0 : vector<1x16xf32>, vector<1x16xf32> -> vector<2x16xf32>
    %30 = tpu.concatenate %16, %28 in 0 : vector<1x16xi32>, vector<1x16xi32> -> vector<2x16xi32>
    %cst_10 = arith.constant dense<0.000000e+00> : vector<16xf32>
    %31 = vector.multi_reduction <add>, %29, %cst_10 [0] : vector<2x16xf32> to vector<16xf32>
    %32 = vector.shape_cast %31 : vector<16xf32> to vector<1x16xf32>
    %33 = vector.broadcast %32 : vector<1x16xf32> to vector<2x16xf32>
    %34 = arith.divf %29, %33 : vector<2x16xf32>
    %c0_11 = arith.constant 0 : index
    %c0_12 = arith.constant 0 : index
    %35 = vector.load %arg3[%c0_11, %c0_12] : memref<2x16xf32, #tpu.memory_space<vmem>>, vector<2x16xf32>
    tpu.vector_store %arg3[%c0_11, %c0_12], %34 {strides = array<i32>} : memref<2x16xf32, #tpu.memory_space<vmem>>, vector<2x16xf32>,
    %c0_13 = arith.constant 0 : index
    %c0_14 = arith.constant 0 : index
    %36 = vector.load %arg4[%c0_13, %c0_14] : memref<2x16xi32, #tpu.memory_space<vmem>>, vector<2x16xi32>
    tpu.vector_store %arg4[%c0_13, %c0_14], %30 {strides = array<i32>} : memref<2x16xi32, #tpu.memory_space<vmem>>, vector<2x16xi32>,
    return
  }
  func.func @transform_0(%arg0: i32) -> (i32, i32) {
    %c0_i32 = arith.constant 0 : i32
    %c0_i32_0 = arith.constant 0 : i32
    return %arg0, %c0_i32 : i32, i32
  }
  func.func @transform_1(%arg0: i32) -> (i32, i32) {
    %c0_i32 = arith.constant 0 : i32
    %c0_i32_0 = arith.constant 0 : i32
    %c0_i32_1 = arith.constant 0 : i32
    return %c0_i32, %c0_i32_0 : i32, i32
  }
  func.func @transform_2(%arg0: i32) -> (i32, i32) {
    %c0_i32 = arith.constant 0 : i32
    %c0_i32_0 = arith.constant 0 : i32
    return %c0_i32, %arg0 : i32, i32
  }
  func.func @transform_3(%arg0: i32) -> (i32, i32) {
    %c0_i32 = arith.constant 0 : i32
    %c0_i32_0 = arith.constant 0 : i32
    return %c0_i32, %arg0 : i32, i32
  }
}

</mosaic_0001>

<llo_original>
// kernel: tpu_custom_call.1
$region0: #{tpu_custom_call.1}
  #allocation0 [shape = 'u32[]', space=smem, size = 0x4, offset = 0x4, fixed_abs, tag = 'smem constant byte address 0x4 - core index']
  #allocation1 [shape = 'u32[144,128]{1,0:T(1,128)}', space=vmem, size = 0x12000, scoped, tag = 'internal scratch']
  %s0 = inlined_call_operand.hbm [shape: f32[16,32], index: 0, kind: input, shape index: {}]
  %s1 = inlined_call_operand.hbm [shape: f32[8,32], index: 1, kind: input, shape index: {}]
  %s2 = inlined_call_operand.hbm [shape: f32[2,16], index: 2, kind: output, shape index: {0}]
  %s3 = inlined_call_operand.hbm [shape: s32[2,16], index: 3, kind: output, shape index: {1}]
  %4 = xla_tuple %s2, %s3
  %s5 = sld [smem:[#allocation0]]
  $region34: #{tpu_custom_call.1} parent=0
    _
  %s7 = ssub.s32 1, %s5
  %s8 = scalar_select 0, %s7, %s5
  $region1: #{tpu_custom_call.1} parent=0
    #allocation2 [shape = 'u8[8192]{0}', space=vmem, size = 0x2000, scoped, tag = 'input window, operand 0, single buffered']
    #allocation3 [shape = 's32[1]{0}', space=sflag, size = 0x4, scoped, tag = 'scoped memory for tpu_custom_call.1']
    #allocation4 [shape = 's32[1]{0}', space=sflag, size = 0x4, scoped, tag = 'scoped memory for tpu_custom_call.1']
    #allocation5 [shape = 'u8[4096]{0}', space=vmem, size = 0x1000, scoped, tag = 'input window, operand 1, single buffered']
    #allocation6 [shape = 's32[1]{0}', space=sflag, size = 0x4, scoped, tag = 'scoped memory for tpu_custom_call.1']
    #allocation7 [shape = 'u8[1024]{0}', space=vmem, size = 0x400, scoped, tag = 'output window, operand 0, single buffered']
    #allocation8 [shape = 'u8[1024]{0}', space=vmem, size = 0x400, scoped, tag = 'output window, operand 1, single buffered']
    #allocation9 [shape = 's32[1]{0}', space=sflag, size = 0x4, scoped, tag = 'scoped memory for tpu_custom_call.1']
    %9 = vsyncpa [#allocation3], 0
    %10 = vsyncpa [#allocation6], 0
    %11 = vsyncpa [#allocation4], 0
    %12 = vsyncpa [#allocation9], 0
    // Predicated region
    $region2: #{tpu_custom_call.1} parent=1 // pred_check
      _
    $region3: #{tpu_custom_call.1} parent=1 // pred_check_branch
      %14 = sbr.rel (0) target = $region5
    $region4: #{tpu_custom_call.1} parent=1 // pred_region
      %s16 = ssub.s32 256, 256
      %17 = vsyncadd [#allocation3], %s16
      %s18 = sshll.u32 [#allocation2], 4
      %s19 = int_to_ptr.vmem [resolvable:$true] %s18
      %24 = dma.hbm_to_vmem [thread:$0]  %s0, 256, %s19, [#allocation3], 128, 128, 8
    $region5: #{tpu_custom_call.1} parent=1 // pred_fallthru
      _
    // Predicated region
    $region6: #{tpu_custom_call.1} parent=1 // pred_check
      _
    $region7: #{tpu_custom_call.1} parent=1 // pred_check_branch
      %26 = sbr.rel (0) target = $region9
    $region8: #{tpu_custom_call.1} parent=1 // pred_region
      %s28 = ssub.s32 128, 128
      %29 = vsyncadd [#allocation6], %s28
      %s31 = sshll.u32 [#allocation5], 4
      %s32 = int_to_ptr.vmem [resolvable:$true] %s31
      %34 = dma.hbm_to_vmem [thread:$0]  %s1, 128, %s32, [#allocation6]
    $region9: #{tpu_custom_call.1} parent=1 // pred_fallthru
      _
    // Predicated region
    $region10: #{tpu_custom_call.1} parent=1 // pred_check
      _
    $region11: #{tpu_custom_call.1} parent=1 // pred_check_branch
      %36 = sbr.rel (0) target = $region13
    $region12: #{tpu_custom_call.1} parent=1 // pred_region
      %37 = dma.done [#allocation3], 256
    $region13: #{tpu_custom_call.1} parent=1 // pred_fallthru
      _
    // Predicated region
    $region14: #{tpu_custom_call.1} parent=1 // pred_check
      _
    $region15: #{tpu_custom_call.1} parent=1 // pred_check_branch
      %39 = sbr.rel (0) target = $region17
    $region16: #{tpu_custom_call.1} parent=1 // pred_region
      %40 = dma.done [#allocation6], 128
    $region17: #{tpu_custom_call.1} parent=1 // pred_fallthru
      _
    %v41 = vld [vmem:[#allocation2] sm:$0xff]
    %v42 = vld [vmem:[#allocation2 + $0x8] sm:$0xff]
    %v43 = vld [vmem:[#allocation5] sm:$0xff]
    %vm44 = vcmask 261120
    %v46 = vsel %vm44, %v43, 0
    %v49 = vsel %vm44, %v41, 0
    %v52 = vsel %vm44, %v42, 0
    %54 = vmatprep.subr.mxu0 0.0
    %55 = vmatpush1.xpose.msra.mxu0 %v49
    %56 = vmatprep.subr.mxu0 0.0
    %57 = vmatpush1.xpose.msra.mxu0 %v52
    %58 = vmatprep.subr.mxu0 0.0
    %59 = vmatpush1.xpose.msra.mxu0 0.0
    %60 = vmatprep.subr.mxu0 0.0
    %61 = vmatpush1.xpose.msra.mxu0 0.0
    %62 = vmatprep.subr.mxu0 0.0
    %63 = vmatpush1.xpose.msra.mxu0 0.0
    %64 = vmatprep.subr.mxu0 0.0
    %65 = vmatpush1.xpose.msra.mxu0 0.0
    %66 = vmatprep.subr.mxu0 0.0
    %67 = vmatpush1.xpose.msra.mxu0 0.0
    %68 = vmatprep.subr.mxu0 0.0
    %69 = vmatpush1.xpose.msra.mxu0 0.0
    %70 = vmatprep.subr.mxu0 0.0
    %71 = vmatpush1.xpose.msra.mxu0 0.0
    %72 = vmatprep.subr.mxu0 0.0
    %73 = vmatpush1.xpose.msra.mxu0 0.0
    %74 = vmatprep.subr.mxu0 0.0
    %75 = vmatpush1.xpose.msra.mxu0 0.0
    %76 = vmatprep.subr.mxu0 0.0
    %77 = vmatpush1.xpose.msra.mxu0 0.0
    %78 = vmatprep.subr.mxu0 0.0
    %79 = vmatpush1.xpose.msra.mxu0 0.0
    %80 = vmatprep.subr.mxu0 0.0
    %81 = vmatpush1.xpose.msra.mxu0 0.0
    %82 = vmatprep.subr.mxu0 0.0
    %83 = vmatpush1.xpose.msra.mxu0 0.0
    %84 = vmatprep.subr.mxu0 0.0
    %85 = vmatpush1.xpose.msra.mxu0 0.0
    %86 = vmatprep.subr.mxu0 0.0
    %87 = vmatpush1.xpose.msra.mxu0 0.0
    %88 = vmatprep.subr.mxu0 0.0
    %89 = vmatpush1.xpose.msra.mxu0 0.0
    %90 = vmatprep.subr.mxu0 0.0
    %91 = vmatpush1.xpose.msra.mxu0 0.0
    %92 = vmatprep.subr.mxu0 0.0
    %93 = vmatpush1.xpose.msra.mxu0 0.0
    %94 = vmatprep.subr.mxu0 0.0
    %95 = vmatpush1.xpose.msra.mxu0 0.0
    %96 = vmatprep.subr.mxu0 0.0
    %97 = vmatpush1.xpose.msra.mxu0 0.0
    %98 = vmatprep.subr.mxu0 0.0
    %99 = vmatpush1.xpose.msra.mxu0 0.0
    %100 = vmatprep.subr.mxu0 0.0
    %101 = vmatpush1.xpose.msra.mxu0 0.0
    %102 = vmatprep.subr.mxu0 0.0
    %103 = vmatpush1.xpose.msra.mxu0 0.0
    %104 = vmatprep.subr.mxu0 0.0
    %105 = vmatpush1.xpose.msra.mxu0 0.0
    %106 = vmatprep.subr.mxu0 0.0
    %107 = vmatpush1.xpose.msra.mxu0 0.0
    %108 = vmatprep.subr.mxu0 0.0
    %109 = vmatpush1.xpose.msra.mxu0 0.0
    %110 = vmatprep.subr.mxu0 0.0
    %111 = vmatpush1.xpose.msra.mxu0 0.0
    %112 = vmatprep.subr.mxu0 0.0
    %113 = vmatpush1.xpose.msra.mxu0 0.0
    %114 = vmatprep.subr.mxu0 0.0
    %115 = vmatpush1.xpose.msra.mxu0 0.0
    %116 = vmatprep.subr.mxu0 0.0
    %117 = vmatpush1.xpose.msra.mxu0 0.0
    %118 = vmatprep.mubr.f32.mxu0 0.0
    %119 = vmatmul.mubr.f32.gmra.mrb[0].mxu0 %v46
    %v120 = vpop.f32.mrb[0].mxu0
    %v121 = vadd.f32 0.0, %v120
    %v122 = vpop.f32.mrb[0].mxu0
    %123 = vdwg.mxu0
    %vm124 = vcmask 130048
    %v125 = vsel %vm124, %v121, -inf
    %v126 = vrot.slane %v125, 4
    %v127 = vmax.f32 %v125, %v126
    %v128 = vrot.slane %v127, 2
    %v129 = vmax.f32 %v127, %v128
    %v130 = vrot.slane %v129, 1
    %v131 = vmax.f32 %v129, %v130
    %v132 = vsub.f32 %v121, %v131
    %v133 = vmul.f32 %v132, 1.442695
    %v134 = vpow.pop %v133
    %v135 = vlaneseq
    %v136 = vshrl.u32 %v135, 7
    %v137 = vsel %vm124, %v134, -inf
    %v138 = vrot.slane %v137, 4
    %v139 = vmax.f32 %v137, %v138
    %v140 = vrot.slane %v139, 2
    %v141 = vmax.f32 %v139, %v140
    %v142 = vrot.slane %v141, 1
    %v143 = vmax.f32 %v141, %v142
    %vm144 = vcmp.eq.f32.partialorder %v134, %v143
    %v145 = vsel %vm144, %v136, 8
    %v146 = vsel %vm124, %v145, 2147483647
    %v147 = vrot.slane %v146, 4
    %vm148 = vcmp.lt.s32.totalorder %v146, %v147
    %v149 = vsel %vm148, %v146, %v147
    %v150 = vrot.slane %v149, 2
    %vm151 = vcmp.lt.s32.totalorder %v149, %v150
    %v152 = vsel %vm151, %v149, %v150
    %v153 = vrot.slane %v152, 1
    %vm154 = vcmp.lt.s32.totalorder %v152, %v153
    %v155 = vsel %vm154, %v152, %v153
    %vm156 = vcmp.eq.s32.totalorder %v136, %v155
    %v157 = vsel %vm156, -inf, %v134
    %v158 = vsel %vm124, %v157, -inf
    %v159 = vrot.slane %v158, 4
    %v160 = vmax.f32 %v158, %v159
    %v161 = vrot.slane %v160, 2
    %v162 = vmax.f32 %v160, %v161
    %v163 = vrot.slane %v162, 1
    %v164 = vmax.f32 %v162, %v163
    %vm165 = vcmp.eq.f32.partialorder %v157, %v164
    %v166 = vsel %vm165, %v136, 8
    %v167 = vsel %vm124, %v166, 2147483647
    %v168 = vrot.slane %v167, 4
    %vm169 = vcmp.lt.s32.totalorder %v167, %v168
    %v170 = vsel %vm169, %v167, %v168
    %v171 = vrot.slane %v170, 2
    %vm172 = vcmp.lt.s32.totalorder %v170, %v171
    %v173 = vsel %vm172, %v170, %v171
    %v174 = vrot.slane %v173, 1
    %vm175 = vcmp.lt.s32.totalorder %v173, %v174
    %v176 = vsel %vm175, %v173, %v174
    %vm177 = vcmask 1040384
    %v178 = vsel %vm177, %v143, %v164
    %v179 = vsel %vm177, %v155, %v176
    %vm180 = vcmask 123904
    %v181 = vsel %vm180, %v178, 0.0
    %v182 = vrot.slane %v181, 4
    %v183 = vadd.f32 %v181, %v182
    %v184 = vrot.slane %v183, 2
    %v185 = vadd.f32 %v183, %v184
    %v186 = vrot.slane %v185, 1
    %v187 = vadd.f32 %v185, %v186
    %v188 = vrcp.pop %v187
    %v189 = vmul.f32 %v178, %v188
    %190 = vst.msk [vmem:[#allocation7] sm:$0x3] %vm180, %v189
    %191 = vst.msk [vmem:[#allocation8] sm:$0x3] %vm180, %v179
    // Predicated region
    $region18: #{tpu_custom_call.1} parent=1 // pred_check
      _
    $region19: #{tpu_custom_call.1} parent=1 // pred_check_branch
      %193 = sbr.rel (0) target = $region21
    $region20: #{tpu_custom_call.1} parent=1 // pred_region
      %s195 = ssub.s32 32, 32
      %196 = vsyncadd [#allocation4], %s195
      %s198 = sshll.u32 [#allocation7], 4
      %s199 = int_to_ptr.vmem [resolvable:$true] %s198
      %201 = dma.vmem_to_hbm [thread:$0]  %s199, 32, %s2, [#allocation4]
    $region21: #{tpu_custom_call.1} parent=1 // pred_fallthru
      _
    // Predicated region
    $region22: #{tpu_custom_call.1} parent=1 // pred_check
      _
    $region23: #{tpu_custom_call.1} parent=1 // pred_check_branch
      %203 = sbr.rel (0) target = $region25
    $region24: #{tpu_custom_call.1} parent=1 // pred_region
      %s205 = ssub.s32 32, 32
      %206 = vsyncadd [#allocation9], %s205
      %s208 = sshll.u32 [#allocation8], 4
      %s209 = int_to_ptr.vmem [resolvable:$true] %s208
      %211 = dma.vmem_to_hbm [thread:$0]  %s209, 32, %s3, [#allocation9]
    $region25: #{tpu_custom_call.1} parent=1 // pred_fallthru
      _
    // Predicated region
    $region26: #{tpu_custom_call.1} parent=1 // pred_check
      _
    $region27: #{tpu_custom_call.1} parent=1 // pred_check_branch
      %213 = sbr.rel (0) target = $region29
    $region28: #{tpu_custom_call.1} parent=1 // pred_region
      %214 = dma.done [#allocation4], 32
    $region29: #{tpu_custom_call.1} parent=1 // pred_fallthru
      _
    // Predicated region
    $region30: #{tpu_custom_call.1} parent=1 // pred_check
      _
    $region31: #{tpu_custom_call.1} parent=1 // pred_check_branch
      %216 = sbr.rel (0) target = $region33
    $region32: #{tpu_custom_call.1} parent=1 // pred_region
      %217 = dma.done [#allocation9], 32
    $region33: #{tpu_custom_call.1} parent=1 // pred_fallthru
      _
    %218 = vsyncpa [#allocation3], 1
    %219 = vsyncpa [#allocation6], 1
    %220 = vsyncpa [#allocation4], 1
    %221 = vsyncpa [#allocation9], 1

</llo_original>
